<compile_context>
chip_gen: v7x
topology: tpu7x:2x2x1
jax: 0.10.0
libtpu: 0.0.40
codegen_flags: <defaults>
</compile_context>

<pallas_src>
import jax
import jax.numpy as jnp
from jax.experimental import pallas as pl
from jax.experimental.pallas import tpu as pltpu


# ----------------------------------------------------------------------------
# One-time parameter re-layout (hoisted out of the per-call wrapper).
# ----------------------------------------------------------------------------
def prepare_groupblock_params(params, *, groups):
    w1, b1 = params['w1'], params['b1']      # (H, C, 3), (H,)
    w2, b2 = params['w2'], params['b2']      # (H, H//groups, 5), (H,)
    w3, b3 = params['w3'], params['b3']      # (C, H, 3), (C,)
    H, C, K1 = w1.shape
    in_pg = w2.shape[1]
    K2 = w2.shape[2]
    K3 = w3.shape[2]
    cg_out = H // groups
    Cp = ((C + 7) // 8) * 8                  # conv3 out-channels padded to a sublane tile
    f32 = jnp.float32

    # conv1: per-tap (H, C) matrices stacked along out-channels -> (K1*H, C)
    w1s = jnp.transpose(w1.astype(f32), (2, 0, 1)).reshape(K1 * H, C)

    # conv2 (grouped): expand to dense block-diagonal (H, H) per tap, then stack.
    w2g = w2.astype(f32).reshape(groups, cg_out, in_pg, K2)
    dense = jnp.einsum('gh,goik->gohik', jnp.eye(groups, dtype=f32), w2g)
    dense = dense.reshape(H, groups * in_pg, K2)                 # (H, H, K2)
    w2s = jnp.transpose(dense, (2, 0, 1)).reshape(K2 * H, groups * in_pg)

    # conv3: per-tap (C, H) padded to (Cp, H) so tap slices stay 8-aligned.
    w3t = jnp.transpose(w3.astype(f32), (2, 0, 1))               # (K3, C, H)
    w3t = jnp.pad(w3t, ((0, 0), (0, Cp - C), (0, 0)))
    w3s = w3t.reshape(K3 * Cp, H)

    # conv2 + conv3 share Cin = H -> pack into one weight slab (fewer operands).
    w23 = jnp.concatenate([w2s, w3s], axis=0)                    # (K2*H + K3*Cp, H)

    # Pack all biases as column vectors into one slab.
    Hb = max(H, Cp)
    bpack = jnp.zeros((Hb, 3), f32)
    bpack = bpack.at[:H, 0].set(b1.astype(f32))
    bpack = bpack.at[:H, 1].set(b2.astype(f32))
    bpack = bpack.at[:C, 2].set(b3.astype(f32))

    return dict(w1s=w1s, w23=w23, bpack=bpack,
                H=H, C=C, Cp=Cp, K1=K1, K2=K2, K3=K3)


# ----------------------------------------------------------------------------
# Fused kernel: 3 convs + 2 ReLUs + residual + ReLU on a lane-dense slab.
# ----------------------------------------------------------------------------
def _make_kernel(*, H, C, Cp, K1, K2, K3, L):
    Pmax = max(K1, K2, K3) // 2

    def kernel(x_ref, w1_ref, w23_ref, bp_ref, o_ref):
        N = x_ref.shape[1]                                  # lanes = B * L
        x = x_ref[...].astype(jnp.float32)                  # (C, N)

        # Boundary masks: a lane roll wraps data across per-batch segment
        # boundaries; those lanes correspond to the conv's zero padding.
        lane = jax.lax.broadcasted_iota(jnp.int32, (1, N), 1)
        pos = lane % L
        masks = {}
        for s in range(-Pmax, Pmax + 1):
            if s == 0:
                continue
            masks[s] = (pos >= s) if s > 0 else (pos < L + s)

        def conv(y, K, Cout, bias):
            # y: (K*Cout, N); tap k lives in rows [k*Cout, (k+1)*Cout).
            P = (K - 1) // 2
            acc = y[P * Cout:(P + 1) * Cout, :] + bias       # centre tap, shift 0
            for k in range(K):
                if k == P:
                    continue
                s = P - k
                t = pltpu.roll(y[k * Cout:(k + 1) * Cout, :], shift=s % N, axis=1)
                acc = acc + jnp.where(masks[s], t, 0.0)
            return acc

        b1 = bp_ref[0:H, 0:1]
        b2 = bp_ref[0:H, 1:2]
        b3 = bp_ref[0:Cp, 2:3]

        # conv1 (C -> H, k=3): one matmul for all taps, tap-combine, ReLU.
        y1 = jnp.dot(w1_ref[...], x, preferred_element_type=jnp.float32)
        h1 = jnp.maximum(conv(y1, K1, H, b1), 0.0)           # (H, N)

        # conv2 (H -> H, k=5, grouped via dense block-diagonal weights), ReLU.
        y2 = jnp.dot(w23_ref[0:K2 * H, :], h1, preferred_element_type=jnp.float32)
        h2 = jnp.maximum(conv(y2, K2, H, b2), 0.0)           # (H, N)

        # conv3 (H -> C, k=3; out-channels padded to Cp).
        y3 = jnp.dot(w23_ref[K2 * H:K2 * H + K3 * Cp, :], h2,
                     preferred_element_type=jnp.float32)
        h3 = conv(y3, K3, Cp, b3)                            # (Cp, N)

        # residual + final ReLU on the valid C channels.
        o_ref[...] = jnp.maximum(h3[0:C, :] + x, 0.0).astype(o_ref.dtype)

    return kernel


def groupblock_pallas(x, prep):
    B, C, L = x.shape
    assert C == prep['C']
    H, Cp = prep['H'], prep['Cp']
    K1, K2, K3 = prep['K1'], prep['K2'], prep['K3']
    N = B * L

    # Lane-dense layout plumbing stays in the wrapper: (B, C, L) -> (C, B*L).
    x2d = jnp.transpose(x, (1, 0, 2)).reshape(C, N)

    kernel = _make_kernel(H=H, C=C, Cp=Cp, K1=K1, K2=K2, K3=K3, L=L)

    w1s, w23, bpack = prep['w1s'], prep['w23'], prep['bpack']

    # One fat grid step: single-TC v5e/v6e want exactly one step, and at these
    # shapes splitting across v7x's two TCs would only duplicate step overhead.
    # TODO(synk): for large B*L, shard the lane axis into 128-multiple tiles
    # (multiples of L) with dimension_semantics=("parallel",) to use both v7x TCs.
    out2d = pl.pallas_call(
        kernel,
        out_shape=jax.ShapeDtypeStruct((C, N), x.dtype),
        grid_spec=pltpu.PrefetchScalarGridSpec(
            num_scalar_prefetch=0,
            grid=(1,),
            in_specs=[
                pl.BlockSpec(x2d.shape, lambda i: (0, 0)),    # activations (C, B*L)
                pl.BlockSpec(w1s.shape, lambda i: (0, 0)),    # conv1 stacked taps
                pl.BlockSpec(w23.shape, lambda i: (0, 0)),    # conv2+conv3 weight slab
                pl.BlockSpec(bpack.shape, lambda i: (0, 0)),  # packed biases
            ],
            out_specs=pl.BlockSpec((C, N), lambda i: (0, 0)),
        ),
        compiler_params=pltpu.CompilerParams(
            dimension_semantics=("arbitrary",)),
    )(x2d, w1s, w23, bpack)

    return out2d.reshape(C, B, L).transpose(1, 0, 2)


# ----------------------------------------------------------------------------
# Pure-JAX reference mirroring the PyTorch forward.
# ----------------------------------------------------------------------------
def groupblock_ref(x, params, *, groups):
    def conv1d(h, w, b, pad, fg=1):
        y = jax.lax.conv_general_dilated(
            h, w, window_strides=(1,), padding=[(pad, pad)],
            dimension_numbers=('NCH', 'OIH', 'NCH'),
            feature_group_count=fg)
        return y + b[None, :, None]

    h = jax.nn.relu(conv1d(x, params['w1'], params['b1'], 1))
    h = jax.nn.relu(conv1d(h, params['w2'], params['b2'], 2, fg=groups))
    h = conv1d(h, params['w3'], params['b3'], 1)
    return jax.nn.relu(h + x)


if __name__ == "__main__":
    B, C, L = 2, 4, 64          # batch, in_channel, sequence length (B*L = 128 lanes)
    H = 16                      # hidden_channel (divisible by groups = in_channel)

    key = jax.random.PRNGKey(0)
    ks = jax.random.split(key, 7)
    params = {
        'w1': jax.random.normal(ks[0], (H, C, 3), jnp.float32) * 0.20,
        'b1': jax.random.normal(ks[1], (H,), jnp.float32) * 0.10,
        'w2': jax.random.normal(ks[2], (H, H // C, 5), jnp.float32) * 0.20,
        'b2': jax.random.normal(ks[3], (H,), jnp.float32) * 0.10,
        'w3': jax.random.normal(ks[4], (C, H, 3), jnp.float32) * 0.20,
        'b3': jax.random.normal(ks[5], (C,), jnp.float32) * 0.10,
    }
    x = jax.random.normal(ks[6], (B, C, L), jnp.float32)

    prep = prepare_groupblock_params(params, groups=C)      # one-time layout prep
    out = groupblock_pallas(x, prep)
    out = jax.block_until_ready(out)

    ref = groupblock_ref(x, params, groups=C)
    assert out.shape == (B, C, L)
    assert jnp.allclose(out, ref, atol=1e-4, rtol=1e-4), "mismatch vs pure-JAX reference"
    print("KERNEL_OK")
</pallas_src>

<mosaic_0001>
module attributes {stable_mosaic.version = 11 : i64} {
  func.func @kernel(%arg0: i32, %arg1: memref<4x128xf32, #tpu.memory_space<vmem>>, %arg2: memref<48x4xf32, #tpu.memory_space<vmem>>, %arg3: memref<104x16xf32, #tpu.memory_space<vmem>>, %arg4: memref<16x3xf32, #tpu.memory_space<vmem>>, %arg5: memref<4x128xf32, #tpu.memory_space<vmem>>) attributes {dimension_semantics = [#tpu.dimension_semantics<arbitrary>], iteration_bounds = array<i64: 1>, scalar_prefetch = 0 : i64, scratch_operands = 0 : i64, tpu.core_type = #tpu.core_type<tc>, window_params = [{pipeline_mode = #tpu.pipeline_mode<synchronous>, transform_indices = @transform_0, window_bounds = array<i64: 4, 128>}, {pipeline_mode = #tpu.pipeline_mode<synchronous>, transform_indices = @transform_1, window_bounds = array<i64: 48, 4>}, {pipeline_mode = #tpu.pipeline_mode<synchronous>, transform_indices = @transform_2, window_bounds = array<i64: 104, 16>}, {pipeline_mode = #tpu.pipeline_mode<synchronous>, transform_indices = @transform_3, window_bounds = array<i64: 16, 3>}, {pipeline_mode = #tpu.pipeline_mode<synchronous>, transform_indices = @transform_4, window_bounds = array<i64: 4, 128>}]} {
    %c0 = arith.constant 0 : index
    %c0_0 = arith.constant 0 : index
    %0 = vector.load %arg1[%c0, %c0_0] : memref<4x128xf32, #tpu.memory_space<vmem>>, vector<4x128xf32>
    %1 = tpu.iota {dimensions = array<i32: 1>} : vector<1x128xi32>
    %c64_i32 = arith.constant 64 : i32
    %c0_i32 = arith.constant 0 : i32
    %2 = arith.cmpi eq, %c64_i32, %c0_i32 : i32
    %c1_i32 = arith.constant 1 : i32
    %3 = arith.select %2, %c1_i32, %c64_i32 : i32
    %4 = vector.broadcast %3 : i32 to vector<1x128xi32>
    %5 = arith.remsi %1, %4 : vector<1x128xi32>
    %c0_i32_1 = arith.constant 0 : i32
    %6 = vector.broadcast %c0_i32_1 : i32 to vector<1x128xi32>
    %7 = arith.cmpi ne, %5, %6 : vector<1x128xi32>
    %c0_i32_2 = arith.constant 0 : i32
    %8 = vector.broadcast %c0_i32_2 : i32 to vector<1x128xi32>
    %9 = arith.cmpi slt, %5, %8 : vector<1x128xi32>
    %c0_i32_3 = arith.constant 0 : i32
    %10 = arith.cmpi slt, %3, %c0_i32_3 : i32
    %11 = vector.broadcast %10 : i1 to vector<1x128xi1>
    %12 = vector.broadcast %11 : vector<1x128xi1> to vector<1x128xi1>
    %13 = arith.xori %9, %12 : vector<1x128xi1>
    %14 = arith.andi %13, %7 : vector<1x128xi1>
    %15 = vector.broadcast %3 : i32 to vector<1x128xi32>
    %16 = arith.addi %5, %15 : vector<1x128xi32>
    %17 = arith.select %14, %16, %5 : vector<1x128xi1>, vector<1x128xi32>
    %c62_i32 = arith.constant 62 : i32
    %18 = vector.broadcast %c62_i32 : i32 to vector<1x128xi32>
    %19 = arith.cmpi slt, %17, %18 : vector<1x128xi32>
    %c63_i32 = arith.constant 63 : i32
    %20 = vector.broadcast %c63_i32 : i32 to vector<1x128xi32>
    %21 = arith.cmpi slt, %17, %20 : vector<1x128xi32>
    %c1_i32_4 = arith.constant 1 : i32
    %22 = vector.broadcast %c1_i32_4 : i32 to vector<1x128xi32>
    %23 = arith.cmpi sge, %17, %22 : vector<1x128xi32>
    %c2_i32 = arith.constant 2 : i32
    %24 = vector.broadcast %c2_i32 : i32 to vector<1x128xi32>
    %25 = arith.cmpi sge, %17, %24 : vector<1x128xi32>
    %c0_5 = arith.constant 0 : index
    %c0_6 = arith.constant 0 : index
    %26 = vector.load %arg4[%c0_5, %c0_6] : memref<16x3xf32, #tpu.memory_space<vmem>>, vector<16x1xf32>
    %c0_7 = arith.constant 0 : index
    %c1 = arith.constant 1 : index
    %27 = vector.load %arg4[%c0_7, %c1] : memref<16x3xf32, #tpu.memory_space<vmem>>, vector<16x1xf32>
    %c0_8 = arith.constant 0 : index
    %c2 = arith.constant 2 : index
    %28 = vector.load %arg4[%c0_8, %c2] : memref<16x3xf32, #tpu.memory_space<vmem>>, vector<8x1xf32>
    %c0_9 = arith.constant 0 : index
    %c0_10 = arith.constant 0 : index
    %29 = vector.load %arg2[%c0_9, %c0_10] : memref<48x4xf32, #tpu.memory_space<vmem>>, vector<48x4xf32>
    %cst = arith.constant dense<0.000000e+00> : vector<48x128xf32>
    %30 = tpu.matmul %29, %0, %cst {dimension_numbers = #tpu.dot_dimension_numbers<[1], [0], [0], [1], [0, 0, 1, 1], [], []>} : vector<48x4xf32>, vector<4x128xf32>, vector<48x128xf32> -> vector<48x128xf32>
    %31 = vector.extract_strided_slice %30 {offsets = [16, 0], sizes = [16, 128], strides = [1, 1]} : vector<48x128xf32> to vector<16x128xf32>
    %32 = vector.broadcast %26 : vector<16x1xf32> to vector<16x128xf32>
    %33 = arith.addf %31, %32 : vector<16x128xf32>
    %34 = vector.extract_strided_slice %30 {offsets = [0, 0], sizes = [16, 128], strides = [1, 1]} : vector<48x128xf32> to vector<16x128xf32>
    %c1_i32_11 = arith.constant 1 : i32
    %35 = tpu.dynamic_rotate %34 by %c1_i32_11 dim 1 : vector<16x128xf32>, i32 -> vector<16x128xf32>
    %cst_12 = arith.constant 0.000000e+00 : f32
    %36 = vector.shape_cast %23 : vector<1x128xi1> to vector<1x128xi1>
    %37 = vector.broadcast %36 : vector<1x128xi1> to vector<16x128xi1>
    %38 = vector.broadcast %cst_12 : f32 to vector<16x128xf32>
    %39 = arith.select %37, %35, %38 : vector<16x128xi1>, vector<16x128xf32>
    %40 = arith.addf %33, %39 : vector<16x128xf32>
    %41 = vector.extract_strided_slice %30 {offsets = [32, 0], sizes = [16, 128], strides = [1, 1]} : vector<48x128xf32> to vector<16x128xf32>
    %c127_i32 = arith.constant 127 : i32
    %42 = tpu.dynamic_rotate %41 by %c127_i32 dim 1 : vector<16x128xf32>, i32 -> vector<16x128xf32>
    %cst_13 = arith.constant 0.000000e+00 : f32
    %43 = vector.shape_cast %21 : vector<1x128xi1> to vector<1x128xi1>
    %44 = vector.broadcast %43 : vector<1x128xi1> to vector<16x128xi1>
    %45 = vector.broadcast %cst_13 : f32 to vector<16x128xf32>
    %46 = arith.select %44, %42, %45 : vector<16x128xi1>, vector<16x128xf32>
    %47 = arith.addf %40, %46 : vector<16x128xf32>
    %cst_14 = arith.constant 0.000000e+00 : f32
    %48 = vector.broadcast %cst_14 : f32 to vector<16x128xf32>
    %49 = arith.maximumf %47, %48 : vector<16x128xf32>
    %c0_15 = arith.constant 0 : index
    %c0_16 = arith.constant 0 : index
    %50 = vector.load %arg3[%c0_15, %c0_16] : memref<104x16xf32, #tpu.memory_space<vmem>>, vector<80x16xf32>
    %cst_17 = arith.constant dense<0.000000e+00> : vector<80x128xf32>
    %51 = tpu.matmul %50, %49, %cst_17 {dimension_numbers = #tpu.dot_dimension_numbers<[1], [0], [0], [1], [0, 0, 1, 1], [], []>} : vector<80x16xf32>, vector<16x128xf32>, vector<80x128xf32> -> vector<80x128xf32>
    %52 = vector.extract_strided_slice %51 {offsets = [32, 0], sizes = [16, 128], strides = [1, 1]} : vector<80x128xf32> to vector<16x128xf32>
    %53 = vector.broadcast %27 : vector<16x1xf32> to vector<16x128xf32>
    %54 = arith.addf %52, %53 : vector<16x128xf32>
    %55 = vector.extract_strided_slice %51 {offsets = [0, 0], sizes = [16, 128], strides = [1, 1]} : vector<80x128xf32> to vector<16x128xf32>
    %c2_i32_18 = arith.constant 2 : i32
    %56 = tpu.dynamic_rotate %55 by %c2_i32_18 dim 1 : vector<16x128xf32>, i32 -> vector<16x128xf32>
    %cst_19 = arith.constant 0.000000e+00 : f32
    %57 = vector.shape_cast %25 : vector<1x128xi1> to vector<1x128xi1>
    %58 = vector.broadcast %57 : vector<1x128xi1> to vector<16x128xi1>
    %59 = vector.broadcast %cst_19 : f32 to vector<16x128xf32>
    %60 = arith.select %58, %56, %59 : vector<16x128xi1>, vector<16x128xf32>
    %61 = arith.addf %54, %60 : vector<16x128xf32>
    %62 = vector.extract_strided_slice %51 {offsets = [16, 0], sizes = [16, 128], strides = [1, 1]} : vector<80x128xf32> to vector<16x128xf32>
    %c1_i32_20 = arith.constant 1 : i32
    %63 = tpu.dynamic_rotate %62 by %c1_i32_20 dim 1 : vector<16x128xf32>, i32 -> vector<16x128xf32>
    %cst_21 = arith.constant 0.000000e+00 : f32
    %64 = vector.shape_cast %23 : vector<1x128xi1> to vector<1x128xi1>
    %65 = vector.broadcast %64 : vector<1x128xi1> to vector<16x128xi1>
    %66 = vector.broadcast %cst_21 : f32 to vector<16x128xf32>
    %67 = arith.select %65, %63, %66 : vector<16x128xi1>, vector<16x128xf32>
    %68 = arith.addf %61, %67 : vector<16x128xf32>
    %69 = vector.extract_strided_slice %51 {offsets = [48, 0], sizes = [16, 128], strides = [1, 1]} : vector<80x128xf32> to vector<16x128xf32>
    %c127_i32_22 = arith.constant 127 : i32
    %70 = tpu.dynamic_rotate %69 by %c127_i32_22 dim 1 : vector<16x128xf32>, i32 -> vector<16x128xf32>
    %cst_23 = arith.constant 0.000000e+00 : f32
    %71 = vector.shape_cast %21 : vector<1x128xi1> to vector<1x128xi1>
    %72 = vector.broadcast %71 : vector<1x128xi1> to vector<16x128xi1>
    %73 = vector.broadcast %cst_23 : f32 to vector<16x128xf32>
    %74 = arith.select %72, %70, %73 : vector<16x128xi1>, vector<16x128xf32>
    %75 = arith.addf %68, %74 : vector<16x128xf32>
    %76 = vector.extract_strided_slice %51 {offsets = [64, 0], sizes = [16, 128], strides = [1, 1]} : vector<80x128xf32> to vector<16x128xf32>
    %c126_i32 = arith.constant 126 : i32
    %77 = tpu.dynamic_rotate %76 by %c126_i32 dim 1 : vector<16x128xf32>, i32 -> vector<16x128xf32>
    %cst_24 = arith.constant 0.000000e+00 : f32
    %78 = vector.shape_cast %19 : vector<1x128xi1> to vector<1x128xi1>
    %79 = vector.broadcast %78 : vector<1x128xi1> to vector<16x128xi1>
    %80 = vector.broadcast %cst_24 : f32 to vector<16x128xf32>
    %81 = arith.select %79, %77, %80 : vector<16x128xi1>, vector<16x128xf32>
    %82 = arith.addf %75, %81 : vector<16x128xf32>
    %cst_25 = arith.constant 0.000000e+00 : f32
    %83 = vector.broadcast %cst_25 : f32 to vector<16x128xf32>
    %84 = arith.maximumf %82, %83 : vector<16x128xf32>
    %c80 = arith.constant 80 : index
    %c0_26 = arith.constant 0 : index
    %85 = vector.load %arg3[%c80, %c0_26] : memref<104x16xf32, #tpu.memory_space<vmem>>, vector<24x16xf32>
    %cst_27 = arith.constant dense<0.000000e+00> : vector<24x128xf32>
    %86 = tpu.matmul %85, %84, %cst_27 {dimension_numbers = #tpu.dot_dimension_numbers<[1], [0], [0], [1], [0, 0, 1, 1], [], []>} : vector<24x16xf32>, vector<16x128xf32>, vector<24x128xf32> -> vector<24x128xf32>
    %87 = vector.extract_strided_slice %86 {offsets = [8, 0], sizes = [8, 128], strides = [1, 1]} : vector<24x128xf32> to vector<8x128xf32>
    %88 = vector.broadcast %28 : vector<8x1xf32> to vector<8x128xf32>
    %89 = arith.addf %87, %88 : vector<8x128xf32>
    %90 = vector.extract_strided_slice %86 {offsets = [0, 0], sizes = [8, 128], strides = [1, 1]} : vector<24x128xf32> to vector<8x128xf32>
    %c1_i32_28 = arith.constant 1 : i32
    %91 = tpu.dynamic_rotate %90 by %c1_i32_28 dim 1 : vector<8x128xf32>, i32 -> vector<8x128xf32>
    %cst_29 = arith.constant 0.000000e+00 : f32
    %92 = vector.shape_cast %23 : vector<1x128xi1> to vector<1x128xi1>
    %93 = vector.broadcast %92 : vector<1x128xi1> to vector<8x128xi1>
    %94 = vector.broadcast %cst_29 : f32 to vector<8x128xf32>
    %95 = arith.select %93, %91, %94 : vector<8x128xi1>, vector<8x128xf32>
    %96 = arith.addf %89, %95 : vector<8x128xf32>
    %97 = vector.extract_strided_slice %86 {offsets = [16, 0], sizes = [8, 128], strides = [1, 1]} : vector<24x128xf32> to vector<8x128xf32>
    %c127_i32_30 = arith.constant 127 : i32
    %98 = tpu.dynamic_rotate %97 by %c127_i32_30 dim 1 : vector<8x128xf32>, i32 -> vector<8x128xf32>
    %cst_31 = arith.constant 0.000000e+00 : f32
    %99 = vector.shape_cast %21 : vector<1x128xi1> to vector<1x128xi1>
    %100 = vector.broadcast %99 : vector<1x128xi1> to vector<8x128xi1>
    %101 = vector.broadcast %cst_31 : f32 to vector<8x128xf32>
    %102 = arith.select %100, %98, %101 : vector<8x128xi1>, vector<8x128xf32>
    %103 = arith.addf %96, %102 : vector<8x128xf32>
    %104 = vector.extract_strided_slice %103 {offsets = [0, 0], sizes = [4, 128], strides = [1, 1]} : vector<8x128xf32> to vector<4x128xf32>
    %105 = arith.addf %104, %0 : vector<4x128xf32>
    %cst_32 = arith.constant 0.000000e+00 : f32
    %106 = vector.broadcast %cst_32 : f32 to vector<4x128xf32>
    %107 = arith.maximumf %105, %106 : vector<4x128xf32>
    %c0_33 = arith.constant 0 : index
    %c0_34 = arith.constant 0 : index
    %108 = vector.load %arg5[%c0_33, %c0_34] : memref<4x128xf32, #tpu.memory_space<vmem>>, vector<4x128xf32>
    tpu.vector_store %arg5[%c0_33, %c0_34], %107 {strides = array<i32>} : memref<4x128xf32, #tpu.memory_space<vmem>>, vector<4x128xf32>,
    return
  }
  func.func @transform_0(%arg0: i32) -> (i32, i32) {
    %c0_i32 = arith.constant 0 : i32
    %c0_i32_0 = arith.constant 0 : i32
    %c0_i32_1 = arith.constant 0 : i32
    return %c0_i32, %c0_i32_0 : i32, i32
  }
  func.func @transform_1(%arg0: i32) -> (i32, i32) {
    %c0_i32 = arith.constant 0 : i32
    %c0_i32_0 = arith.constant 0 : i32
    %c0_i32_1 = arith.constant 0 : i32
    return %c0_i32, %c0_i32_0 : i32, i32
  }
  func.func @transform_2(%arg0: i32) -> (i32, i32) {
    %c0_i32 = arith.constant 0 : i32
    %c0_i32_0 = arith.constant 0 : i32
    %c0_i32_1 = arith.constant 0 : i32
    return %c0_i32, %c0_i32_0 : i32, i32
  }
  func.func @transform_3(%arg0: i32) -> (i32, i32) {
    %c0_i32 = arith.constant 0 : i32
    %c0_i32_0 = arith.constant 0 : i32
    %c0_i32_1 = arith.constant 0 : i32
    return %c0_i32, %c0_i32_0 : i32, i32
  }
  func.func @transform_4(%arg0: i32) -> (i32, i32) {
    %c0_i32 = arith.constant 0 : i32
    %c0_i32_0 = arith.constant 0 : i32
    %c0_i32_1 = arith.constant 0 : i32
    return %c0_i32, %c0_i32_0 : i32, i32
  }
}

</mosaic_0001>

<llo_original>
// kernel: tpu_custom_call.1
$region0: #{tpu_custom_call.1}
  #allocation0 [shape = 'u32[]', space=smem, size = 0x4, offset = 0x4, fixed_abs, tag = 'smem constant byte address 0x4 - core index']
  #allocation1 [shape = 'u32[144,128]{1,0:T(1,128)}', space=vmem, size = 0x12000, scoped, tag = 'internal scratch']
  %s0 = inlined_call_operand.vmem [shape: f32[4,128], index: 0, kind: input, shape index: {}]
  %s1 = inlined_call_operand.vmem [shape: f32[48,4], index: 1, kind: input, shape index: {}]
  %s2 = inlined_call_operand.vmem [shape: f32[104,16], index: 2, kind: input, shape index: {}]
  %s3 = inlined_call_operand.vmem [shape: f32[16,3], index: 3, kind: input, shape index: {}]
  %s4 = inlined_call_operand.hbm [shape: f32[4,128], index: 4, kind: output, shape index: {}]
  %s5 = sld [smem:[#allocation0]]
  $region26: #{tpu_custom_call.1} parent=0
    _
  %s7 = ssub.s32 1, %s5
  %s8 = scalar_select 0, %s7, %s5
  $region1: #{tpu_custom_call.1} parent=0
    #allocation2 [shape = 'u8[2048]{0}', space=vmem, size = 0x800, scoped, tag = 'output window, operand 0, single buffered']
    #allocation3 [shape = 's32[1]{0}', space=sflag, size = 0x4, scoped, tag = 'scoped memory for tpu_custom_call.1']
    %9 = vsyncpa [#allocation3], 0
    // Predicated region
    $region2: #{tpu_custom_call.1} parent=1 // pred_check
      _
    $region3: #{tpu_custom_call.1} parent=1 // pred_check_branch
      %11 = sbr.rel (0) target = $region5
    $region4: #{tpu_custom_call.1} parent=1 // pred_region
      _
    $region5: #{tpu_custom_call.1} parent=1 // pred_fallthru
      _
    // Predicated region
    $region6: #{tpu_custom_call.1} parent=1 // pred_check
      _
    $region7: #{tpu_custom_call.1} parent=1 // pred_check_branch
      %13 = sbr.rel (0) target = $region9
    $region8: #{tpu_custom_call.1} parent=1 // pred_region
      _
    $region9: #{tpu_custom_call.1} parent=1 // pred_fallthru
      _
    // Predicated region
    $region10: #{tpu_custom_call.1} parent=1 // pred_check
      _
    $region11: #{tpu_custom_call.1} parent=1 // pred_check_branch
      %15 = sbr.rel (0) target = $region13
    $region12: #{tpu_custom_call.1} parent=1 // pred_region
      _
    $region13: #{tpu_custom_call.1} parent=1 // pred_fallthru
      _
    // Predicated region
    $region14: #{tpu_custom_call.1} parent=1 // pred_check
      _
    $region15: #{tpu_custom_call.1} parent=1 // pred_check_branch
      %17 = sbr.rel (0) target = $region17
    $region16: #{tpu_custom_call.1} parent=1 // pred_region
      _
    $region17: #{tpu_custom_call.1} parent=1 // pred_fallthru
      _
    %v18 = vld [vmem:[%s0] sm:$0xf]
    %v19 = vlaneseq
    %v20 = vand.u32 %v19, 127
    %vm21 = vcmp.lt.s32.totalorder %v20, 0
    %v22 = vsub.s32 0, %v20
    %v23 = vsel %vm21, %v22, %v20
    %v24 = vshrl.u32 %v23, 6
    %v25 = vand.u32 %v23, 63
    %v26 = vsub.s32 0, %v25
    %v27 = vsel %vm21, %v26, %v25
    %vm28 = vcmp.ne.s32.totalorder %v27, 0
    %vm29 = vcmp.lt.s32.totalorder %v27, 0
    %vm30 = vmand %vm29, %vm28
    %v31 = vadd.s32 %v27, 64
    %v32 = vsel %vm30, %v31, %v27
    %vm33 = vcmp.lt.s32.totalorder %v32, 62
    %vm34 = vcmp.lt.s32.totalorder %v32, 63
    %vm35 = vcmp.ge.s32.totalorder %v32, 1
    %vm36 = vcmp.ge.s32.totalorder %v32, 2
    %v37 = vld [vmem:[%s3] sm:$0xff]
    %v38 = vld [vmem:[%s3 + $0x8] sm:$0xff]
    %v39 = vld [vmem:[%s1] sm:$0xff]
    %v40 = vld [vmem:[%s1 + $0x8] sm:$0xff]
    %v41 = vld [vmem:[%s1 + $0x10] sm:$0xff]
    %v42 = vld [vmem:[%s1 + $0x18] sm:$0xff]
    %v43 = vld [vmem:[%s1 + $0x20] sm:$0xff]
    %v44 = vld [vmem:[%s1 + $0x28] sm:$0xff]
    %vm45 = vcmask 31744
    %v47 = vsel %vm45, %v39, 0
    %v50 = vsel %vm45, %v40, 0
    %v53 = vsel %vm45, %v41, 0
    %v56 = vsel %vm45, %v42, 0
    %v59 = vsel %vm45, %v43, 0
    %v62 = vsel %vm45, %v44, 0
    %vm64 = vcmask 1043456
    %v66 = vsel %vm64, %v18, 0
    %68 = vmatprep.subr.mxu0 0.0
    %69 = vmatpush1.msra.mxu0 %v66
    %70 = vmatprep.subr.mxu0 0.0
    %71 = vmatpush1.msra.mxu0 0.0
    %72 = vmatprep.subr.mxu0 0.0
    %73 = vmatpush1.msra.mxu0 0.0
    %74 = vmatprep.subr.mxu0 0.0
    %75 = vmatpush1.msra.mxu0 0.0
    %76 = vmatprep.subr.mxu0 0.0
    %77 = vmatpush1.msra.mxu0 0.0
    %78 = vmatprep.subr.mxu0 0.0
    %79 = vmatpush1.msra.mxu0 0.0
    %80 = vmatprep.subr.mxu0 0.0
    %81 = vmatpush1.msra.mxu0 0.0
    %82 = vmatprep.subr.mxu0 0.0
    %83 = vmatpush1.msra.mxu0 0.0
    %84 = vmatprep.subr.mxu0 0.0
    %85 = vmatpush1.msra.mxu0 0.0
    %86 = vmatprep.subr.mxu0 0.0
    %87 = vmatpush1.msra.mxu0 0.0
    %88 = vmatprep.subr.mxu0 0.0
    %89 = vmatpush1.msra.mxu0 0.0
    %90 = vmatprep.subr.mxu0 0.0
    %91 = vmatpush1.msra.mxu0 0.0
    %92 = vmatprep.subr.mxu0 0.0
    %93 = vmatpush1.msra.mxu0 0.0
    %94 = vmatprep.subr.mxu0 0.0
    %95 = vmatpush1.msra.mxu0 0.0
    %96 = vmatprep.subr.mxu0 0.0
    %97 = vmatpush1.msra.mxu0 0.0
    %98 = vmatprep.subr.mxu0 0.0
    %99 = vmatpush1.msra.mxu0 0.0
    %100 = vmatprep.subr.mxu0 0.0
    %101 = vmatpush1.msra.mxu0 0.0
    %102 = vmatprep.subr.mxu0 0.0
    %103 = vmatpush1.msra.mxu0 0.0
    %104 = vmatprep.subr.mxu0 0.0
    %105 = vmatpush1.msra.mxu0 0.0
    %106 = vmatprep.subr.mxu0 0.0
    %107 = vmatpush1.msra.mxu0 0.0
    %108 = vmatprep.subr.mxu0 0.0
    %109 = vmatpush1.msra.mxu0 0.0
    %110 = vmatprep.subr.mxu0 0.0
    %111 = vmatpush1.msra.mxu0 0.0
    %112 = vmatprep.subr.mxu0 0.0
    %113 = vmatpush1.msra.mxu0 0.0
    %114 = vmatprep.subr.mxu0 0.0
    %115 = vmatpush1.msra.mxu0 0.0
    %116 = vmatprep.subr.mxu0 0.0
    %117 = vmatpush1.msra.mxu0 0.0
    %118 = vmatprep.subr.mxu0 0.0
    %119 = vmatpush1.msra.mxu0 0.0
    %120 = vmatprep.subr.mxu0 0.0
    %121 = vmatpush1.msra.mxu0 0.0
    %122 = vmatprep.subr.mxu0 0.0
    %123 = vmatpush1.msra.mxu0 0.0
    %124 = vmatprep.subr.mxu0 0.0
    %125 = vmatpush1.msra.mxu0 0.0
    %126 = vmatprep.subr.mxu0 0.0
    %127 = vmatpush1.msra.mxu0 0.0
    %128 = vmatprep.subr.mxu0 0.0
    %129 = vmatpush1.msra.mxu0 0.0
    %130 = vmatprep.subr.mxu0 0.0
    %131 = vmatpush1.msra.mxu0 0.0
    %132 = vmatprep.mubr.f32.mxu0 0.0
    %133 = vmatmul.mubr.f32.gmra.mrb[0].mxu0 %v47
    %v134 = vpop.f32.mrb[0].mxu0
    %v135 = vadd.f32 0.0, %v134
    %v136 = vpop.f32.mrb[0].mxu0
    %137 = vmatprep.mubr.f32.mxu0 0.0
    %138 = vmatmul.mubr.f32.gmra.mrb[0].mxu0 %v50
    %v139 = vpop.f32.mrb[0].mxu0
    %v140 = vadd.f32 0.0, %v139
    %v141 = vpop.f32.mrb[0].mxu0
    %142 = vmatprep.mubr.f32.mxu0 0.0
    %143 = vmatmul.mubr.f32.gmra.mrb[0].mxu0 %v53
    %v144 = vpop.f32.mrb[0].mxu0
    %v145 = vadd.f32 0.0, %v144
    %v146 = vpop.f32.mrb[0].mxu0
    %147 = vmatprep.mubr.f32.mxu0 0.0
    %148 = vmatmul.mubr.f32.gmra.mrb[0].mxu0 %v56
    %v149 = vpop.f32.mrb[0].mxu0
    %v150 = vadd.f32 0.0, %v149
    %v151 = vpop.f32.mrb[0].mxu0
    %152 = vmatprep.mubr.f32.mxu0 0.0
    %153 = vmatmul.mubr.f32.gmra.mrb[0].mxu0 %v59
    %v154 = vpop.f32.mrb[0].mxu0
    %v155 = vadd.f32 0.0, %v154
    %v156 = vpop.f32.mrb[0].mxu0
    %157 = vmatprep.mubr.f32.mxu0 0.0
    %158 = vmatmul.mubr.f32.gmra.mrb[0].mxu0 %v62
    %v159 = vpop.f32.mrb[0].mxu0
    %v160 = vadd.f32 0.0, %v159
    %v161 = vpop.f32.mrb[0].mxu0
    %162 = vdwg.mxu0
    %164 = vset.pattern.permute.xlu0 0
    %165 = vperm.xlu0 %164, %v37
    %v166 = vpop.permute.xlu0 %165
    %169 = vset.pattern.permute.xlu0 0
    %170 = vperm.xlu0 %169, %v38
    %v171 = vpop.permute.xlu0 %170
    %v173 = vadd.f32 %v145, %v166
    %v174 = vadd.f32 %v150, %v171
    %175 = vrot.lane.b32.xlu0 %v135, 1
    %v176 = vpop.permute.xlu0 %175
    %177 = vrot.lane.b32.xlu0 %v140, 1
    %v178 = vpop.permute.xlu0 %177
    %v179 = vsel %vm35, 1, 0
    %vm180 = vcmp.eq.s32.totalorder %v179, 1
    %v181 = vsel %vm180, %v176, 0.0
    %v182 = vsel %vm180, %v178, 0.0
    %v183 = vadd.f32 %v173, %v181
    %v184 = vadd.f32 %v174, %v182
    %185 = vrot.lane.b32.xlu0 %v155, 127
    %v186 = vpop.permute.xlu0 %185
    %187 = vrot.lane.b32.xlu0 %v160, 127
    %v188 = vpop.permute.xlu0 %187
    %v189 = vsel %vm34, 1, 0
    %vm190 = vcmp.eq.s32.totalorder %v189, 1
    %v191 = vsel %vm190, %v186, 0.0
    %v192 = vsel %vm190, %v188, 0.0
    %v193 = vadd.f32 %v183, %v191
    %v194 = vadd.f32 %v184, %v192
    %v195 = vmax.f32 %v193, 0.0
    %v196 = vmax.f32 %v194, 0.0
    %v197 = vld [vmem:[%s2] sm:$0xff]
    %v198 = vld [vmem:[%s2 + $0x8] sm:$0xff]
    %v199 = vld [vmem:[%s2 + $0x10] sm:$0xff]
    %v200 = vld [vmem:[%s2 + $0x18] sm:$0xff]
    %v201 = vld [vmem:[%s2 + $0x20] sm:$0xff]
    %v202 = vld [vmem:[%s2 + $0x28] sm:$0xff]
    %v203 = vld [vmem:[%s2 + $0x30] sm:$0xff]
    %v204 = vld [vmem:[%s2 + $0x38] sm:$0xff]
    %v205 = vld [vmem:[%s2 + $0x40] sm:$0xff]
    %v206 = vld [vmem:[%s2 + $0x48] sm:$0xff]
    %vm207 = vcmask 130048
    %v209 = vsel %vm207, %v197, 0
    %v212 = vsel %vm207, %v198, 0
    %v215 = vsel %vm207, %v199, 0
    %v218 = vsel %vm207, %v200, 0
    %v221 = vsel %vm207, %v201, 0
    %v224 = vsel %vm207, %v202, 0
    %v227 = vsel %vm207, %v203, 0
    %v230 = vsel %vm207, %v204, 0
    %v233 = vsel %vm207, %v205, 0
    %v236 = vsel %vm207, %v206, 0
    %238 = vmatprep.subr.mxu0 0.0
    %239 = vmatpush1.msra.mxu0 %v195
    %240 = vmatprep.subr.mxu0 0.0
    %241 = vmatpush1.msra.mxu0 %v196
    %242 = vmatprep.subr.mxu0 0.0
    %243 = vmatpush1.msra.mxu0 0.0
    %244 = vmatprep.subr.mxu0 0.0
    %245 = vmatpush1.msra.mxu0 0.0
    %246 = vmatprep.subr.mxu0 0.0
    %247 = vmatpush1.msra.mxu0 0.0
    %248 = vmatprep.subr.mxu0 0.0
    %249 = vmatpush1.msra.mxu0 0.0
    %250 = vmatprep.subr.mxu0 0.0
    %251 = vmatpush1.msra.mxu0 0.0
    %252 = vmatprep.subr.mxu0 0.0
    %253 = vmatpush1.msra.mxu0 0.0
    %254 = vmatprep.subr.mxu0 0.0
    %255 = vmatpush1.msra.mxu0 0.0
    %256 = vmatprep.subr.mxu0 0.0
    %257 = vmatpush1.msra.mxu0 0.0
    %258 = vmatprep.subr.mxu0 0.0
    %259 = vmatpush1.msra.mxu0 0.0
    %260 = vmatprep.subr.mxu0 0.0
    %261 = vmatpush1.msra.mxu0 0.0
    %262 = vmatprep.subr.mxu0 0.0
    %263 = vmatpush1.msra.mxu0 0.0
    %264 = vmatprep.subr.mxu0 0.0
    %265 = vmatpush1.msra.mxu0 0.0
    %266 = vmatprep.subr.mxu0 0.0
    %267 = vmatpush1.msra.mxu0 0.0
    %268 = vmatprep.subr.mxu0 0.0
    %269 = vmatpush1.msra.mxu0 0.0
    %270 = vmatprep.subr.mxu0 0.0
    %271 = vmatpush1.msra.mxu0 0.0
    %272 = vmatprep.subr.mxu0 0.0
    %273 = vmatpush1.msra.mxu0 0.0
    %274 = vmatprep.subr.mxu0 0.0
    %275 = vmatpush1.msra.mxu0 0.0
    %276 = vmatprep.subr.mxu0 0.0
    %277 = vmatpush1.msra.mxu0 0.0
    %278 = vmatprep.subr.mxu0 0.0
    %279 = vmatpush1.msra.mxu0 0.0
    %280 = vmatprep.subr.mxu0 0.0
    %281 = vmatpush1.msra.mxu0 0.0
    %282 = vmatprep.subr.mxu0 0.0
    %283 = vmatpush1.msra.mxu0 0.0
    %284 = vmatprep.subr.mxu0 0.0
    %285 = vmatpush1.msra.mxu0 0.0
    %286 = vmatprep.subr.mxu0 0.0
    %287 = vmatpush1.msra.mxu0 0.0
    %288 = vmatprep.subr.mxu0 0.0
    %289 = vmatpush1.msra.mxu0 0.0
    %290 = vmatprep.subr.mxu0 0.0
    %291 = vmatpush1.msra.mxu0 0.0
    %292 = vmatprep.subr.mxu0 0.0
    %293 = vmatpush1.msra.mxu0 0.0
    %294 = vmatprep.subr.mxu0 0.0
    %295 = vmatpush1.msra.mxu0 0.0
    %296 = vmatprep.subr.mxu0 0.0
    %297 = vmatpush1.msra.mxu0 0.0
    %298 = vmatprep.subr.mxu0 0.0
    %299 = vmatpush1.msra.mxu0 0.0
    %300 = vmatprep.subr.mxu0 0.0
    %301 = vmatpush1.msra.mxu0 0.0
    %302 = vmatprep.mubr.f32.mxu0 0.0
    %303 = vmatmul.mubr.f32.gmra.mrb[0].mxu0 %v209
    %v304 = vpop.f32.mrb[0].mxu0
    %v305 = vadd.f32 0.0, %v304
    %v306 = vpop.f32.mrb[0].mxu0
    %307 = vmatprep.mubr.f32.mxu0 0.0
    %308 = vmatmul.mubr.f32.gmra.mrb[0].mxu0 %v212
    %v309 = vpop.f32.mrb[0].mxu0
    %v310 = vadd.f32 0.0, %v309
    %v311 = vpop.f32.mrb[0].mxu0
    %312 = vmatprep.mubr.f32.mxu0 0.0
    %313 = vmatmul.mubr.f32.gmra.mrb[0].mxu0 %v215
    %v314 = vpop.f32.mrb[0].mxu0
    %v315 = vadd.f32 0.0, %v314
    %v316 = vpop.f32.mrb[0].mxu0
    %317 = vmatprep.mubr.f32.mxu0 0.0
    %318 = vmatmul.mubr.f32.gmra.mrb[0].mxu0 %v218
    %v319 = vpop.f32.mrb[0].mxu0
    %v320 = vadd.f32 0.0, %v319
    %v321 = vpop.f32.mrb[0].mxu0
    %322 = vmatprep.mubr.f32.mxu0 0.0
    %323 = vmatmul.mubr.f32.gmra.mrb[0].mxu0 %v221
    %v324 = vpop.f32.mrb[0].mxu0
    %v325 = vadd.f32 0.0, %v324
    %v326 = vpop.f32.mrb[0].mxu0
    %327 = vmatprep.mubr.f32.mxu0 0.0
    %328 = vmatmul.mubr.f32.gmra.mrb[0].mxu0 %v224
    %v329 = vpop.f32.mrb[0].mxu0
    %v330 = vadd.f32 0.0, %v329
    %v331 = vpop.f32.mrb[0].mxu0
    %332 = vmatprep.mubr.f32.mxu0 0.0
    %333 = vmatmul.mubr.f32.gmra.mrb[0].mxu0 %v227
    %v334 = vpop.f32.mrb[0].mxu0
    %v335 = vadd.f32 0.0, %v334
    %v336 = vpop.f32.mrb[0].mxu0
    %337 = vmatprep.mubr.f32.mxu0 0.0
    %338 = vmatmul.mubr.f32.gmra.mrb[0].mxu0 %v230
    %v339 = vpop.f32.mrb[0].mxu0
    %v340 = vadd.f32 0.0, %v339
    %v341 = vpop.f32.mrb[0].mxu0
    %342 = vmatprep.mubr.f32.mxu0 0.0
    %343 = vmatmul.mubr.f32.gmra.mrb[0].mxu0 %v233
    %v344 = vpop.f32.mrb[0].mxu0
    %v345 = vadd.f32 0.0, %v344
    %v346 = vpop.f32.mrb[0].mxu0
    %347 = vmatprep.mubr.f32.mxu0 0.0
    %348 = vmatmul.mubr.f32.gmra.mrb[0].mxu0 %v236
    %v349 = vpop.f32.mrb[0].mxu0
    %v350 = vadd.f32 0.0, %v349
    %v351 = vpop.f32.mrb[0].mxu0
    %352 = vdwg.mxu0
    %353 = vset.pattern.permute.xlu0 1
    %354 = vperm.xlu0 %353, %v37
    %v355 = vpop.permute.xlu0 %354
    %357 = vset.pattern.permute.xlu0 1
    %358 = vperm.xlu0 %357, %v38
    %v359 = vpop.permute.xlu0 %358
    %v361 = vadd.f32 %v325, %v355
    %v362 = vadd.f32 %v330, %v359
    %363 = vrot.lane.b32.xlu0 %v305, 2
    %v364 = vpop.permute.xlu0 %363
    %365 = vrot.lane.b32.xlu0 %v310, 2
    %v366 = vpop.permute.xlu0 %365
    %v367 = vsel %vm36, 1, 0
    %vm368 = vcmp.eq.s32.totalorder %v367, 1
    %v369 = vsel %vm368, %v364, 0.0
    %v370 = vsel %vm368, %v366, 0.0
    %v371 = vadd.f32 %v361, %v369
    %v372 = vadd.f32 %v362, %v370
    %373 = vrot.lane.b32.xlu0 %v315, 1
    %v374 = vpop.permute.xlu0 %373
    %375 = vrot.lane.b32.xlu0 %v320, 1
    %v376 = vpop.permute.xlu0 %375
    %v377 = vsel %vm180, %v374, 0.0
    %v378 = vsel %vm180, %v376, 0.0
    %v379 = vadd.f32 %v371, %v377
    %v380 = vadd.f32 %v372, %v378
    %381 = vrot.lane.b32.xlu0 %v335, 127
    %v382 = vpop.permute.xlu0 %381
    %383 = vrot.lane.b32.xlu0 %v340, 127
    %v384 = vpop.permute.xlu0 %383
    %v385 = vsel %vm190, %v382, 0.0
    %v386 = vsel %vm190, %v384, 0.0
    %v387 = vadd.f32 %v379, %v385
    %v388 = vadd.f32 %v380, %v386
    %389 = vrot.lane.b32.xlu0 %v345, 126
    %v390 = vpop.permute.xlu0 %389
    %391 = vrot.lane.b32.xlu0 %v350, 126
    %v392 = vpop.permute.xlu0 %391
    %v393 = vsel %vm33, 1, 0
    %vm394 = vcmp.eq.s32.totalorder %v393, 1
    %v395 = vsel %vm394, %v390, 0.0
    %v396 = vsel %vm394, %v392, 0.0
    %v397 = vadd.f32 %v387, %v395
    %v398 = vadd.f32 %v388, %v396
    %v399 = vmax.f32 %v397, 0.0
    %v400 = vmax.f32 %v398, 0.0
    %v401 = vld [vmem:[%s2 + $0x50] sm:$0xff]
    %v402 = vld [vmem:[%s2 + $0x58] sm:$0xff]
    %v403 = vld [vmem:[%s2 + $0x60] sm:$0xff]
    %v405 = vsel %vm207, %v401, 0
    %v408 = vsel %vm207, %v402, 0
    %v411 = vsel %vm207, %v403, 0
    %413 = vmatprep.subr.mxu0 0.0
    %414 = vmatpush1.msra.mxu0 %v399
    %415 = vmatprep.subr.mxu0 0.0
    %416 = vmatpush1.msra.mxu0 %v400
    %417 = vmatprep.subr.mxu0 0.0
    %418 = vmatpush1.msra.mxu0 0.0
    %419 = vmatprep.subr.mxu0 0.0
    %420 = vmatpush1.msra.mxu0 0.0
    %421 = vmatprep.subr.mxu0 0.0
    %422 = vmatpush1.msra.mxu0 0.0
    %423 = vmatprep.subr.mxu0 0.0
    %424 = vmatpush1.msra.mxu0 0.0
    %425 = vmatprep.subr.mxu0 0.0
    %426 = vmatpush1.msra.mxu0 0.0
    %427 = vmatprep.subr.mxu0 0.0
    %428 = vmatpush1.msra.mxu0 0.0
    %429 = vmatprep.subr.mxu0 0.0
    %430 = vmatpush1.msra.mxu0 0.0
    %431 = vmatprep.subr.mxu0 0.0
    %432 = vmatpush1.msra.mxu0 0.0
    %433 = vmatprep.subr.mxu0 0.0
    %434 = vmatpush1.msra.mxu0 0.0
    %435 = vmatprep.subr.mxu0 0.0
    %436 = vmatpush1.msra.mxu0 0.0
    %437 = vmatprep.subr.mxu0 0.0
    %438 = vmatpush1.msra.mxu0 0.0
    %439 = vmatprep.subr.mxu0 0.0
    %440 = vmatpush1.msra.mxu0 0.0
    %441 = vmatprep.subr.mxu0 0.0
    %442 = vmatpush1.msra.mxu0 0.0
    %443 = vmatprep.subr.mxu0 0.0
    %444 = vmatpush1.msra.mxu0 0.0
    %445 = vmatprep.subr.mxu0 0.0
    %446 = vmatpush1.msra.mxu0 0.0
    %447 = vmatprep.subr.mxu0 0.0
    %448 = vmatpush1.msra.mxu0 0.0
    %449 = vmatprep.subr.mxu0 0.0
    %450 = vmatpush1.msra.mxu0 0.0
    %451 = vmatprep.subr.mxu0 0.0
    %452 = vmatpush1.msra.mxu0 0.0
    %453 = vmatprep.subr.mxu0 0.0
    %454 = vmatpush1.msra.mxu0 0.0
    %455 = vmatprep.subr.mxu0 0.0
    %456 = vmatpush1.msra.mxu0 0.0
    %457 = vmatprep.subr.mxu0 0.0
    %458 = vmatpush1.msra.mxu0 0.0
    %459 = vmatprep.subr.mxu0 0.0
    %460 = vmatpush1.msra.mxu0 0.0
    %461 = vmatprep.subr.mxu0 0.0
    %462 = vmatpush1.msra.mxu0 0.0
    %463 = vmatprep.subr.mxu0 0.0
    %464 = vmatpush1.msra.mxu0 0.0
    %465 = vmatprep.subr.mxu0 0.0
    %466 = vmatpush1.msra.mxu0 0.0
    %467 = vmatprep.subr.mxu0 0.0
    %468 = vmatpush1.msra.mxu0 0.0
    %469 = vmatprep.subr.mxu0 0.0
    %470 = vmatpush1.msra.mxu0 0.0
    %471 = vmatprep.subr.mxu0 0.0
    %472 = vmatpush1.msra.mxu0 0.0
    %473 = vmatprep.subr.mxu0 0.0
    %474 = vmatpush1.msra.mxu0 0.0
    %475 = vmatprep.subr.mxu0 0.0
    %476 = vmatpush1.msra.mxu0 0.0
    %477 = vmatprep.mubr.f32.mxu0 0.0
    %478 = vmatmul.mubr.f32.gmra.mrb[0].mxu0 %v405
    %v479 = vpop.f32.mrb[0].mxu0
    %v480 = vadd.f32 0.0, %v479
    %v481 = vpop.f32.mrb[0].mxu0
    %482 = vmatprep.mubr.f32.mxu0 0.0
    %483 = vmatmul.mubr.f32.gmra.mrb[0].mxu0 %v408
    %v484 = vpop.f32.mrb[0].mxu0
    %v485 = vadd.f32 0.0, %v484
    %v486 = vpop.f32.mrb[0].mxu0
    %487 = vmatprep.mubr.f32.mxu0 0.0
    %488 = vmatmul.mubr.f32.gmra.mrb[0].mxu0 %v411
    %v489 = vpop.f32.mrb[0].mxu0
    %v490 = vadd.f32 0.0, %v489
    %v491 = vpop.f32.mrb[0].mxu0
    %492 = vdwg.mxu0
    %493 = vset.pattern.permute.xlu0 2
    %494 = vperm.xlu0 %493, %v37
    %v495 = vpop.permute.xlu0 %494
    %v497 = vadd.f32 %v485, %v495
    %498 = vrot.lane.b32.xlu0 %v480, 1
    %v499 = vpop.permute.xlu0 %498
    %v500 = vsel %vm180, %v499, 0.0
    %v501 = vadd.f32 %v497, %v500
    %502 = vrot.lane.b32.xlu0 %v490, 127
    %v503 = vpop.permute.xlu0 %502
    %v504 = vsel %vm190, %v503, 0.0
    %v505 = vadd.f32 %v501, %v504
    %v506 = vadd.f32 %v505, %v18
    %v507 = vmax.f32 %v506, 0.0
    %508 = vst [vmem:[#allocation2] sm:$0xf] %v507
    // Predicated region
    $region18: #{tpu_custom_call.1} parent=1 // pred_check
      _
    $region19: #{tpu_custom_call.1} parent=1 // pred_check_branch
      %510 = sbr.rel (0) target = $region21
    $region20: #{tpu_custom_call.1} parent=1 // pred_region
      %s512 = ssub.s32 64, 64
      %513 = vsyncadd [#allocation3], %s512
      %s515 = sshll.u32 [#allocation2], 4
      %s516 = int_to_ptr.vmem [resolvable:$true] %s515
      %518 = dma.vmem_to_hbm [thread:$0]  %s516, 64, %s4, [#allocation3]
    $region21: #{tpu_custom_call.1} parent=1 // pred_fallthru
      _
    // Predicated region
    $region22: #{tpu_custom_call.1} parent=1 // pred_check
      _
    $region23: #{tpu_custom_call.1} parent=1 // pred_check_branch
      %520 = sbr.rel (0) target = $region25
    $region24: #{tpu_custom_call.1} parent=1 // pred_region
      %521 = dma.done [#allocation3], 64
    $region25: #{tpu_custom_call.1} parent=1 // pred_fallthru
      _
    %522 = vsyncpa [#allocation3], 1

</llo_original>
